<compile_context>
chip_gen: v7x
topology: tpu7x:2x2x1
jax: 0.10.0
libtpu: 0.0.40
codegen_flags: <defaults>
</compile_context>

<pallas_src>
import numpy as np
import jax
import jax.numpy as jnp
from jax.experimental import pallas as pl
from jax.experimental.pallas import tpu as pltpu


# ----------------------------- Pallas kernel (fully fused, single matmul) -----------------------------

def _fused_kernel(x_ref, m_ref, b_ref, o_ref):
    """x: (N, 32), m: (32, 512), b: (1, 512) -> o: (N, 512) NCHW-flat.

    One MXU pass + bias, then the hard-swish-like epilogue on the VPU.
    """
    y = jnp.dot(x_ref[...], m_ref[...], preferred_element_type=jnp.float32) + b_ref[...]
    o_ref[...] = y * jnp.clip(y + 3.0, 0.0, 6.0) * (1.0 / 6.0)


# ----------------------------- one-time weight packing -----------------------------

def _convt_matrix(w_t, b, Hi, Wi, *, stride, padding, output_padding, out_order):
    """Fold a ConvTranspose2d (acting on a fixed (Hi, Wi) spatial input) into a matrix.

    Returns (M, B, (Ho, Wo)) with  y_flat = x_flat @ M + B,
      x_flat ordered NHWC-flat: row = (iy*Wi + ix)*Cin + cin
      y_flat ordered per `out_order`:
        "NHWC": col = (oy*Wo + ox)*Cout + cout
        "NCHW": col = cout*(Ho*Wo) + oy*Wo + ox
    The zero-insertion (stride), padding, output_padding and weight flip of the
    transposed conv are all encoded in the scatter, so no padded tensors ever exist.
    """
    w = np.asarray(w_t, np.float32)          # (Cin, Cout, K, K), PyTorch layout
    bias = np.asarray(b, np.float32)
    Cin, Cout, K, _ = w.shape
    Ho = (Hi - 1) * stride - 2 * padding + K + output_padding
    Wo = (Wi - 1) * stride - 2 * padding + K + output_padding
    M = np.zeros((Hi * Wi * Cin, Ho * Wo * Cout), np.float32)
    for iy in range(Hi):
        for ix in range(Wi):
            r0 = (iy * Wi + ix) * Cin
            for ky in range(K):
                oy = iy * stride - padding + ky
                if not (0 <= oy < Ho):
                    continue
                for kx in range(K):
                    ox = ix * stride - padding + kx
                    if not (0 <= ox < Wo):
                        continue
                    if out_order == "NHWC":
                        cols = (oy * Wo + ox) * Cout + np.arange(Cout)
                    else:  # NCHW-flat
                        cols = np.arange(Cout) * (Ho * Wo) + (oy * Wo + ox)
                    M[r0:r0 + Cin, cols] += w[:, :, ky, kx]
    if out_order == "NHWC":
        B = np.tile(bias, Ho * Wo)
    else:
        B = np.repeat(bias, Ho * Wo)
    return M, B.reshape(1, -1), (Ho, Wo)


# ----------------------------- model -----------------------------

class PallasModel:
    """Mirrors the PyTorch Model: 3 ConvTranspose2d layers + residual hard-swish-like."""

    def __init__(self, key):
        ks = jax.random.split(key, 6)

        def init(kw, kb, cin, cout, ksz):
            bound = 1.0 / (cin * ksz * ksz) ** 0.5
            w = jax.random.uniform(kw, (cin, cout, ksz, ksz), jnp.float32, -bound, bound)
            b = jax.random.uniform(kb, (cout,), jnp.float32, -bound, bound)
            return w, b

        self.w1, self.b1 = init(ks[0], ks[1], 32, 15, 3)
        self.w2, self.b2 = init(ks[2], ks[3], 15, 15, 3)
        self.w3, self.b3 = init(ks[4], ks[5], 15, 32, 3)

        # --- one-time packing: each deconv stage becomes a scatter matrix ---
        W1, B1, s1 = _convt_matrix(self.w1, self.b1, 1, 1,
                                   stride=2, padding=1, output_padding=0, out_order="NHWC")
        W2, B2, s2 = _convt_matrix(self.w2, self.b2, s1[0], s1[1],
                                   stride=2, padding=1, output_padding=1, out_order="NHWC")
        W3, B3, s3 = _convt_matrix(self.w3, self.b3, s2[0], s2[1],
                                   stride=1, padding=0, output_padding=0, out_order="NCHW")
        self._Ho, self._Wo = s3
        self._Cout = self.w3.shape[1]

        # Residual scatter: x1[n, c] is added to every spatial position of output channel c
        # (NCHW-flat column order, matching W3's packing).
        hw = self._Ho * self._Wo
        R = np.zeros((32, self._Cout * hw), np.float32)
        for c in range(32):
            R[c, c * hw:(c + 1) * hw] = 1.0

        # --- fold the whole affine chain into one matrix + one bias (review item #1) ---
        #   x5 = ((x@W1 + B1)@W2 + B2)@W3 + B3 + x@R
        #      = x @ (W1@W2@W3 + R) + ((B1@W2 + B2)@W3 + B3)
        M_total = W1 @ W2 @ W3 + R                      # (32, 512), NCHW-flat columns
        b_total = (B1 @ W2 + B2) @ W3 + B3              # (1, 512)

        self._M = jnp.asarray(M_total, jnp.float32)
        self._b = jnp.asarray(b_total, jnp.float32)

    def __call__(self, x1_nchw):
        N, C, H, W = x1_nchw.shape
        assert H == 1 and W == 1, "x1 + x4 only broadcasts when x1 spatial is 1x1"
        x_flat = x1_nchw.reshape(N, C)                  # free reshape (1x1 spatial)
        n_out = self._M.shape[1]

        flops = 2 * N * C * n_out
        bytes_accessed = 4 * (N * C + self._M.size + self._b.size + N * n_out)

        out_flat = pl.pallas_call(
            _fused_kernel,
            out_shape=jax.ShapeDtypeStruct((N, n_out), jnp.float32),
            in_specs=[pl.BlockSpec(memory_space=pltpu.MemorySpace.VMEM),
                      pl.BlockSpec(memory_space=pltpu.MemorySpace.VMEM),
                      pl.BlockSpec(memory_space=pltpu.MemorySpace.VMEM)],
            out_specs=pl.BlockSpec(memory_space=pltpu.MemorySpace.VMEM),
            cost_estimate=pl.CostEstimate(flops=flops, transcendentals=0,
                                          bytes_accessed=bytes_accessed),
            # single program, no grid: latency-bound tiny workload -> never shard
            # across cores / grid axes (explicitly per v7x review guidance).
        )(x_flat, self._M, self._b)
        # output is already NCHW-flat -> contiguous (free) reshape, no transpose op
        return out_flat.reshape(N, self._Cout, self._Ho, self._Wo)


# ----------------------------- plain-JAX reference -----------------------------

def _ref_conv_transpose(x, w_t, b, stride, padding, output_padding):
    K = w_t.shape[2]
    w_conv = jnp.flip(w_t, axis=(2, 3)).transpose(2, 3, 0, 1)
    lo = K - 1 - padding
    hi = lo + output_padding
    y = jax.lax.conv_general_dilated(
        x, w_conv, window_strides=(1, 1),
        padding=[(lo, hi), (lo, hi)], lhs_dilation=(stride, stride),
        dimension_numbers=("NHWC", "HWIO", "NHWC"))
    return y + b.reshape(1, 1, 1, -1)


if __name__ == "__main__":
    key = jax.random.PRNGKey(0)
    kx, kp = jax.random.split(key)

    # spatial must be 1x1 for the module's x1 + x4 residual to be shape-valid
    x1_nchw = jax.random.normal(kx, (2, 32, 1, 1), jnp.float32)

    model = PallasModel(kp)
    out = jax.block_until_ready(model(x1_nchw))

    # reference check against the original staged computation (plain JAX)
    x1 = jnp.transpose(x1_nchw, (0, 2, 3, 1))
    r2 = _ref_conv_transpose(x1, model.w1, model.b1, 2, 1, 0)
    r3 = _ref_conv_transpose(r2, model.w2, model.b2, 2, 1, 1)
    r4 = _ref_conv_transpose(r3, model.w3, model.b3, 1, 0, 0)
    x5 = x1 + r4
    ref = jnp.transpose(x5 * jnp.clip(x5 + 3.0, 0.0, 6.0) / 6.0, (0, 3, 1, 2))

    assert out.shape == (2, 32, 4, 4), out.shape
    err = float(jnp.max(jnp.abs(out - ref)))
    assert jnp.allclose(out, ref, atol=1e-4, rtol=1e-4), err
    print("KERNEL_OK")
</pallas_src>

<mosaic_0001>
module attributes {stable_mosaic.version = 11 : i64} {
  func.func @_fused_kernel(%arg0: memref<2x32xf32, #tpu.memory_space<vmem>>, %arg1: memref<32x512xf32, #tpu.memory_space<vmem>>, %arg2: memref<1x512xf32, #tpu.memory_space<vmem>>, %arg3: memref<2x512xf32, #tpu.memory_space<vmem>>) attributes {dimension_semantics = [], scalar_prefetch = 0 : i64, scratch_operands = 0 : i64, tpu.core_type = #tpu.core_type<tc>} {
    %c0 = arith.constant 0 : index
    %c0_0 = arith.constant 0 : index
    %0 = vector.load %arg0[%c0, %c0_0] : memref<2x32xf32, #tpu.memory_space<vmem>>, vector<2x32xf32>
    %c0_1 = arith.constant 0 : index
    %c0_2 = arith.constant 0 : index
    %1 = vector.load %arg1[%c0_1, %c0_2] : memref<32x512xf32, #tpu.memory_space<vmem>>, vector<32x512xf32>
    %cst = arith.constant dense<0.000000e+00> : vector<2x512xf32>
    %2 = tpu.matmul %0, %1, %cst {dimension_numbers = #tpu.dot_dimension_numbers<[1], [0], [0], [1], [0, 0, 1, 1], [], []>} : vector<2x32xf32>, vector<32x512xf32>, vector<2x512xf32> -> vector<2x512xf32>
    %c0_3 = arith.constant 0 : index
    %c0_4 = arith.constant 0 : index
    %3 = vector.load %arg2[%c0_3, %c0_4] : memref<1x512xf32, #tpu.memory_space<vmem>>, vector<1x512xf32>
    %4 = vector.broadcast %3 : vector<1x512xf32> to vector<2x512xf32>
    %5 = arith.addf %2, %4 : vector<2x512xf32>
    %cst_5 = arith.constant 3.000000e+00 : f32
    %6 = vector.broadcast %cst_5 : f32 to vector<2x512xf32>
    %7 = arith.addf %5, %6 : vector<2x512xf32>
    %cst_6 = arith.constant 0.000000e+00 : f32
    %cst_7 = arith.constant 6.000000e+00 : f32
    %8 = vector.broadcast %cst_6 : f32 to vector<2x512xf32>
    %9 = arith.maximumf %8, %7 : vector<2x512xf32>
    %10 = vector.broadcast %cst_7 : f32 to vector<2x512xf32>
    %11 = arith.minimumf %10, %9 : vector<2x512xf32>
    %12 = arith.mulf %5, %11 : vector<2x512xf32>
    %cst_8 = arith.constant 0.166666672 : f32
    %13 = vector.broadcast %cst_8 : f32 to vector<2x512xf32>
    %14 = arith.mulf %12, %13 : vector<2x512xf32>
    %c0_9 = arith.constant 0 : index
    %c0_10 = arith.constant 0 : index
    %15 = vector.load %arg3[%c0_9, %c0_10] : memref<2x512xf32, #tpu.memory_space<vmem>>, vector<2x512xf32>
    tpu.vector_store %arg3[%c0_9, %c0_10], %14 {strides = array<i32>} : memref<2x512xf32, #tpu.memory_space<vmem>>, vector<2x512xf32>,
    return
  }
}

</mosaic_0001>

<llo_original>
// kernel: tpu_custom_call.1
$region0: #{tpu_custom_call.1}
  #allocation0 [shape = 'u32[]', space=smem, size = 0x4, offset = 0x4, fixed_abs, tag = 'smem constant byte address 0x4 - core index']
  #allocation1 [shape = 'u32[144,128]{1,0:T(1,128)}', space=vmem, size = 0x12000, scoped, tag = 'internal scratch']
  %s0 = inlined_call_operand.hbm [shape: f32[2,32], index: 0, kind: input, shape index: {}]
  %s1 = inlined_call_operand.hbm [shape: f32[32,512], index: 1, kind: input, shape index: {}]
  %s2 = inlined_call_operand.vmem [shape: f32[1,512], index: 2, kind: input, shape index: {}]
  %s3 = inlined_call_operand.hbm [shape: f32[2,512], index: 3, kind: output, shape index: {}]
  %s4 = sld [smem:[#allocation0]]
  $region30: #{tpu_custom_call.1} parent=0
    _
  %s6 = ssub.s32 1, %s4
  %s7 = scalar_select 0, %s6, %s4
  $region1: #{tpu_custom_call.1} parent=0
    #allocation2 [shape = 'u8[1024]{0}', space=vmem, size = 0x400, scoped, tag = 'input window, operand 0, single buffered']
    #allocation3 [shape = 's32[1]{0}', space=sflag, size = 0x4, scoped, tag = 'scoped memory for tpu_custom_call.1']
    #allocation4 [shape = 's32[1]{0}', space=sflag, size = 0x4, scoped, tag = 'scoped memory for tpu_custom_call.1']
    #allocation5 [shape = 'u8[65536]{0}', space=vmem, size = 0x10000, scoped, tag = 'input window, operand 1, single buffered']
    #allocation6 [shape = 's32[1]{0}', space=sflag, size = 0x4, scoped, tag = 'scoped memory for tpu_custom_call.1']
    #allocation7 [shape = 'u8[4096]{0}', space=vmem, size = 0x1000, scoped, tag = 'output window, operand 0, single buffered']
    %8 = vsyncpa [#allocation3], 0
    %9 = vsyncpa [#allocation6], 0
    %10 = vsyncpa [#allocation4], 0
    // Predicated region
    $region2: #{tpu_custom_call.1} parent=1 // pred_check
      _
    $region3: #{tpu_custom_call.1} parent=1 // pred_check_branch
      %12 = sbr.rel (0) target = $region5
    $region4: #{tpu_custom_call.1} parent=1 // pred_region
      %s14 = ssub.s32 32, 32
      %15 = vsyncadd [#allocation3], %s14
      %s17 = sshll.u32 [#allocation2], 4
      %s18 = int_to_ptr.vmem [resolvable:$true] %s17
      %20 = dma.hbm_to_vmem [thread:$0]  %s0, 32, %s18, [#allocation3]
    $region5: #{tpu_custom_call.1} parent=1 // pred_fallthru
      _
    // Predicated region
    $region6: #{tpu_custom_call.1} parent=1 // pred_check
      _
    $region7: #{tpu_custom_call.1} parent=1 // pred_check_branch
      %22 = sbr.rel (0) target = $region9
    $region8: #{tpu_custom_call.1} parent=1 // pred_region
      %s24 = ssub.s32 2048, 2048
      %25 = vsyncadd [#allocation6], %s24
      %s26 = sshll.u32 [#allocation5], 4
      %s27 = int_to_ptr.vmem [resolvable:$true] %s26
      %32 = dma.hbm_to_vmem [thread:$0]  %s1, 2048, %s27, [#allocation6], 512, 512, 32
    $region9: #{tpu_custom_call.1} parent=1 // pred_fallthru
      _
    // Predicated region
    $region10: #{tpu_custom_call.1} parent=1 // pred_check
      _
    $region11: #{tpu_custom_call.1} parent=1 // pred_check_branch
      %34 = sbr.rel (0) target = $region13
    $region12: #{tpu_custom_call.1} parent=1 // pred_region
      _
    $region13: #{tpu_custom_call.1} parent=1 // pred_fallthru
      _
    // Predicated region
    $region14: #{tpu_custom_call.1} parent=1 // pred_check
      _
    $region15: #{tpu_custom_call.1} parent=1 // pred_check_branch
      %36 = sbr.rel (0) target = $region17
    $region16: #{tpu_custom_call.1} parent=1 // pred_region
      %37 = dma.done [#allocation3], 32
    $region17: #{tpu_custom_call.1} parent=1 // pred_fallthru
      _
    // Predicated region
    $region18: #{tpu_custom_call.1} parent=1 // pred_check
      _
    $region19: #{tpu_custom_call.1} parent=1 // pred_check_branch
      %39 = sbr.rel (0) target = $region21
    $region20: #{tpu_custom_call.1} parent=1 // pred_region
      %40 = dma.done [#allocation6], 2048
    $region21: #{tpu_custom_call.1} parent=1 // pred_fallthru
      _
    %v41 = vld [vmem:[#allocation2] sm:$0x3]
    %v42 = vld [vmem:[#allocation5] sm:$0xff]
    %v43 = vld [vmem:[#allocation5 + $0x8] sm:$0xff]
    %v44 = vld [vmem:[#allocation5 + $0x10] sm:$0xff]
    %v45 = vld [vmem:[#allocation5 + $0x18] sm:$0xff]
    %v46 = vld [vmem:[#allocation5 + $0x20] sm:$0xff]
    %v47 = vld [vmem:[#allocation5 + $0x28] sm:$0xff]
    %v48 = vld [vmem:[#allocation5 + $0x30] sm:$0xff]
    %v49 = vld [vmem:[#allocation5 + $0x38] sm:$0xff]
    %v50 = vld [vmem:[#allocation5 + $0x40] sm:$0xff]
    %v51 = vld [vmem:[#allocation5 + $0x48] sm:$0xff]
    %v52 = vld [vmem:[#allocation5 + $0x50] sm:$0xff]
    %v53 = vld [vmem:[#allocation5 + $0x58] sm:$0xff]
    %v54 = vld [vmem:[#allocation5 + $0x60] sm:$0xff]
    %v55 = vld [vmem:[#allocation5 + $0x68] sm:$0xff]
    %v56 = vld [vmem:[#allocation5 + $0x70] sm:$0xff]
    %v57 = vld [vmem:[#allocation5 + $0x78] sm:$0xff]
    %v58 = vld [vmem:[%s2] sm:$0xf]
    %v60 = vlaneseq
    %v61 = vshrl.u32 %v60, 7
    %v62 = vsub.s32 0, %v61
    %v63 = vrot.slane %v58, %v62
    %v64 = vlaneseq
    %v65 = vshrl.u32 %v64, 7
    %v66 = vsub.s32 1, %v65
    %v67 = vrot.slane %v58, %v66
    %v68 = vlaneseq
    %v69 = vshrl.u32 %v68, 7
    %v70 = vsub.s32 2, %v69
    %v71 = vrot.slane %v58, %v70
    %v72 = vlaneseq
    %v73 = vshrl.u32 %v72, 7
    %v74 = vsub.s32 3, %v73
    %v75 = vrot.slane %v58, %v74
    %vm80 = vcmask 261120
    %v82 = vsel %vm80, %v41, 0
    %84 = vmatprep.subr.mxu0 %v43
    %85 = vmatpush1.msra.mxu0 %v42
    %86 = vmatprep.subr.mxu0 %v47
    %87 = vmatpush1.msra.mxu0 %v46
    %88 = vmatprep.subr.mxu0 %v51
    %89 = vmatpush1.msra.mxu0 %v50
    %90 = vmatprep.subr.mxu0 %v55
    %91 = vmatpush1.msra.mxu0 %v54
    %92 = vmatprep.subr.mxu0 0.0
    %93 = vmatpush1.msra.mxu0 0.0
    %94 = vmatprep.subr.mxu0 0.0
    %95 = vmatpush1.msra.mxu0 0.0
    %96 = vmatprep.subr.mxu0 0.0
    %97 = vmatpush1.msra.mxu0 0.0
    %98 = vmatprep.subr.mxu0 0.0
    %99 = vmatpush1.msra.mxu0 0.0
    %100 = vmatprep.subr.mxu0 0.0
    %101 = vmatpush1.msra.mxu0 0.0
    %102 = vmatprep.subr.mxu0 0.0
    %103 = vmatpush1.msra.mxu0 0.0
    %104 = vmatprep.subr.mxu0 0.0
    %105 = vmatpush1.msra.mxu0 0.0
    %106 = vmatprep.subr.mxu0 0.0
    %107 = vmatpush1.msra.mxu0 0.0
    %108 = vmatprep.subr.mxu0 0.0
    %109 = vmatpush1.msra.mxu0 0.0
    %110 = vmatprep.subr.mxu0 0.0
    %111 = vmatpush1.msra.mxu0 0.0
    %112 = vmatprep.subr.mxu0 0.0
    %113 = vmatpush1.msra.mxu0 0.0
    %114 = vmatprep.subr.mxu0 0.0
    %115 = vmatpush1.msra.mxu0 0.0
    %116 = vmatprep.subr.mxu0 0.0
    %117 = vmatpush1.msra.mxu0 0.0
    %118 = vmatprep.subr.mxu0 0.0
    %119 = vmatpush1.msra.mxu0 0.0
    %120 = vmatprep.subr.mxu0 0.0
    %121 = vmatpush1.msra.mxu0 0.0
    %122 = vmatprep.subr.mxu0 0.0
    %123 = vmatpush1.msra.mxu0 0.0
    %124 = vmatprep.subr.mxu0 0.0
    %125 = vmatpush1.msra.mxu0 0.0
    %126 = vmatprep.subr.mxu0 0.0
    %127 = vmatpush1.msra.mxu0 0.0
    %128 = vmatprep.subr.mxu0 0.0
    %129 = vmatpush1.msra.mxu0 0.0
    %130 = vmatprep.subr.mxu0 0.0
    %131 = vmatpush1.msra.mxu0 0.0
    %132 = vmatprep.subr.mxu0 0.0
    %133 = vmatpush1.msra.mxu0 0.0
    %134 = vmatprep.subr.mxu0 0.0
    %135 = vmatpush1.msra.mxu0 0.0
    %136 = vmatprep.subr.mxu0 0.0
    %137 = vmatpush1.msra.mxu0 0.0
    %138 = vmatprep.subr.mxu0 0.0
    %139 = vmatpush1.msra.mxu0 0.0
    %140 = vmatprep.subr.mxu0 0.0
    %141 = vmatpush1.msra.mxu0 0.0
    %142 = vmatprep.subr.mxu0 0.0
    %143 = vmatpush1.msra.mxu0 0.0
    %144 = vmatprep.subr.mxu0 0.0
    %145 = vmatpush1.msra.mxu0 0.0
    %146 = vmatprep.subr.mxu0 0.0
    %147 = vmatpush1.msra.mxu0 0.0
    %148 = vmatprep.mubr.f32.mxu0 0.0
    %149 = vmatmul.mubr.f32.gmra.mrb[0].mxu0 %v82
    %v150 = vpop.f32.mrb[0].mxu0
    %v151 = vadd.f32 %v63, %v150
    %v152 = vpop.f32.mrb[0].mxu0
    %v153 = vadd.f32 %v67, %v152
    %154 = vdwg.mxu0
    %155 = vmatprep.subr.mxu0 %v45
    %156 = vmatpush1.msra.mxu0 %v44
    %157 = vmatprep.subr.mxu0 %v49
    %158 = vmatpush1.msra.mxu0 %v48
    %159 = vmatprep.subr.mxu0 %v53
    %160 = vmatpush1.msra.mxu0 %v52
    %161 = vmatprep.subr.mxu0 %v57
    %162 = vmatpush1.msra.mxu0 %v56
    %163 = vmatprep.subr.mxu0 0.0
    %164 = vmatpush1.msra.mxu0 0.0
    %165 = vmatprep.subr.mxu0 0.0
    %166 = vmatpush1.msra.mxu0 0.0
    %167 = vmatprep.subr.mxu0 0.0
    %168 = vmatpush1.msra.mxu0 0.0
    %169 = vmatprep.subr.mxu0 0.0
    %170 = vmatpush1.msra.mxu0 0.0
    %171 = vmatprep.subr.mxu0 0.0
    %172 = vmatpush1.msra.mxu0 0.0
    %173 = vmatprep.subr.mxu0 0.0
    %174 = vmatpush1.msra.mxu0 0.0
    %175 = vmatprep.subr.mxu0 0.0
    %176 = vmatpush1.msra.mxu0 0.0
    %177 = vmatprep.subr.mxu0 0.0
    %178 = vmatpush1.msra.mxu0 0.0
    %179 = vmatprep.subr.mxu0 0.0
    %180 = vmatpush1.msra.mxu0 0.0
    %181 = vmatprep.subr.mxu0 0.0
    %182 = vmatpush1.msra.mxu0 0.0
    %183 = vmatprep.subr.mxu0 0.0
    %184 = vmatpush1.msra.mxu0 0.0
    %185 = vmatprep.subr.mxu0 0.0
    %186 = vmatpush1.msra.mxu0 0.0
    %187 = vmatprep.subr.mxu0 0.0
    %188 = vmatpush1.msra.mxu0 0.0
    %189 = vmatprep.subr.mxu0 0.0
    %190 = vmatpush1.msra.mxu0 0.0
    %191 = vmatprep.subr.mxu0 0.0
    %192 = vmatpush1.msra.mxu0 0.0
    %193 = vmatprep.subr.mxu0 0.0
    %194 = vmatpush1.msra.mxu0 0.0
    %195 = vmatprep.subr.mxu0 0.0
    %196 = vmatpush1.msra.mxu0 0.0
    %197 = vmatprep.subr.mxu0 0.0
    %198 = vmatpush1.msra.mxu0 0.0
    %199 = vmatprep.subr.mxu0 0.0
    %200 = vmatpush1.msra.mxu0 0.0
    %201 = vmatprep.subr.mxu0 0.0
    %202 = vmatpush1.msra.mxu0 0.0
    %203 = vmatprep.subr.mxu0 0.0
    %204 = vmatpush1.msra.mxu0 0.0
    %205 = vmatprep.subr.mxu0 0.0
    %206 = vmatpush1.msra.mxu0 0.0
    %207 = vmatprep.subr.mxu0 0.0
    %208 = vmatpush1.msra.mxu0 0.0
    %209 = vmatprep.subr.mxu0 0.0
    %210 = vmatpush1.msra.mxu0 0.0
    %211 = vmatprep.subr.mxu0 0.0
    %212 = vmatpush1.msra.mxu0 0.0
    %213 = vmatprep.subr.mxu0 0.0
    %214 = vmatpush1.msra.mxu0 0.0
    %215 = vmatprep.subr.mxu0 0.0
    %216 = vmatpush1.msra.mxu0 0.0
    %217 = vmatprep.subr.mxu0 0.0
    %218 = vmatpush1.msra.mxu0 0.0
    %219 = vmatprep.mubr.f32.mxu0 0.0
    %220 = vmatmul.mubr.f32.gmra.mrb[0].mxu0 %v82
    %v221 = vpop.f32.mrb[0].mxu0
    %v222 = vadd.f32 %v71, %v221
    %v223 = vpop.f32.mrb[0].mxu0
    %v224 = vadd.f32 %v75, %v223
    %225 = vdwg.mxu0
    %v226 = vadd.f32 %v151, 3.0
    %v227 = vadd.f32 %v153, 3.0
    %v228 = vadd.f32 %v222, 3.0
    %v229 = vadd.f32 %v224, 3.0
    %v230 = vmax.f32 %v226, 0.0
    %v231 = vmax.f32 %v227, 0.0
    %v232 = vmax.f32 %v228, 0.0
    %v233 = vmax.f32 %v229, 0.0
    %v234 = vmin.f32 %v230, 6.0
    %v235 = vmin.f32 %v231, 6.0
    %v236 = vmin.f32 %v232, 6.0
    %v237 = vmin.f32 %v233, 6.0
    %v238 = vmul.f32 %v151, %v234
    %v239 = vmul.f32 %v153, %v235
    %v240 = vmul.f32 %v222, %v236
    %v241 = vmul.f32 %v224, %v237
    %v242 = vmul.f32 %v238, 0.16666667
    %v243 = vmul.f32 %v239, 0.16666667
    %v244 = vmul.f32 %v240, 0.16666667
    %v245 = vmul.f32 %v241, 0.16666667
    %v250 = vcombine.low %v242, %v243
    %v251 = vcombine.low %v244, %v245
    %v253 = vunpack.c.l.s4 1983009808
    %v254 = vunpack.c.0.s8 %v253
    %v255 = vlaneseq
    %v256 = vshrl.u32 %v255, 7
    %v257 = vsub.s32 %v254, %v256
    %v258 = vrot.slane %v250, %v257
    %v260 = vunpack.c.l.s4 1983009808
    %v261 = vunpack.c.0.s8 %v260
    %v262 = vlaneseq
    %v263 = vshrl.u32 %v262, 7
    %v264 = vsub.s32 %v261, %v263
    %v265 = vrot.slane %v251, %v264
    %v266 = vcombine.low %v258, %v265
    %268 = vst [vmem:[#allocation7] sm:$0xff] %v266
    // Predicated region
    $region22: #{tpu_custom_call.1} parent=1 // pred_check
      _
    $region23: #{tpu_custom_call.1} parent=1 // pred_check_branch
      %270 = sbr.rel (0) target = $region25
    $region24: #{tpu_custom_call.1} parent=1 // pred_region
      %s272 = ssub.s32 128, 128
      %273 = vsyncadd [#allocation4], %s272
      %s275 = sshll.u32 [#allocation7], 4
      %s276 = int_to_ptr.vmem [resolvable:$true] %s275
      %278 = dma.vmem_to_hbm [thread:$0]  %s276, 128, %s3, [#allocation4]
    $region25: #{tpu_custom_call.1} parent=1 // pred_fallthru
      _
    // Predicated region
    $region26: #{tpu_custom_call.1} parent=1 // pred_check
      _
    $region27: #{tpu_custom_call.1} parent=1 // pred_check_branch
      %280 = sbr.rel (0) target = $region29
    $region28: #{tpu_custom_call.1} parent=1 // pred_region
      %281 = dma.done [#allocation4], 128
    $region29: #{tpu_custom_call.1} parent=1 // pred_fallthru
      _
    %282 = vsyncpa [#allocation3], 1
    %283 = vsyncpa [#allocation6], 1
    %284 = vsyncpa [#allocation4], 1

</llo_original>
